<compile_context>
chip_gen: v6e
topology: v6e:2x2x1
jax: 0.10.0
libtpu: 0.0.40
codegen_flags: <defaults>
</compile_context>

<pallas_src>
import math
from functools import partial

import jax
import jax.numpy as jnp
from jax.experimental import pallas as pl
from jax.experimental.pallas import tpu as pltpu


def _attention_kernel(x_ref, w_ref, v_ref, out_ref, att_ref, *, matmul_dtype):
    # x_ref:   (B_N, W, H)  block of batch rows (f32 or bf16)
    # w_ref:   (H, H)
    # v_ref:   (1, H)       f32
    # out_ref: (B_N, H)     (size-1 middle dim squeezed; restored in wrapper)
    # att_ref: (B_N, W, 1)  f32 (reshaped to (N, W) in wrapper)
    bn, wlen, h = x_ref.shape
    x = x_ref[...]                                   # (B_N, W, H)

    # One MXU matmul over all B_N*W rows; f32 accumulate, f32 tanh (EUP).
    x2 = x.reshape(bn * wlen, h)
    wplus = jnp.tanh(
        jnp.dot(x2.astype(matmul_dtype), w_ref[...].astype(matmul_dtype),
                preferred_element_type=jnp.float32)
    ).reshape(bn, wlen, h)                           # (B_N, W, H), f32

    # scores = wplus @ v : elementwise mul + lane (last-axis) reduce.
    scores = jnp.sum(wplus * v_ref[...], axis=-1, keepdims=True)   # (B_N, W, 1)

    # Numerically stable softmax over the word axis (axis=1, sublanes -- no
    # transpose).  Exact reciprocal + multiply instead of per-element divide.
    m = jnp.max(scores, axis=1, keepdims=True)
    p = jnp.exp(scores - m)
    denom = jnp.sum(p, axis=1, keepdims=True)
    att = p * pl.reciprocal(denom, approx=False)     # (B_N, W, 1), f32

    att_ref[...] = att

    # Weighted average over words (sublane reduce).
    if matmul_dtype == jnp.bfloat16:
        # Multiply in bf16 (native VALU on v6e/v7x), accumulate the word-axis
        # sum in f32.  Avoids a full f32 copy of the x block.
        out = jnp.sum(att.astype(jnp.bfloat16) * x.astype(jnp.bfloat16),
                      axis=1, dtype=jnp.float32)
    else:
        out = jnp.sum(att * x.astype(jnp.float32), axis=1)          # (B_N, H)
    out_ref[...] = out.astype(out_ref.dtype)


def _pick_block_n(n, w, h, itemsize, target_bytes):
    """Pick the batch-block size B_N.

    Constraints: B_N divides n and (B_N % 8 == 0 or B_N == n) so the (B_N, H)
    output block is legal.  Prefers (a) blocks whose x tile fits target_bytes,
    (b) an even number of grid steps (>= 4 if possible) so v7x's two
    TensorCores split the parallel axis evenly, while keeping the DMA block
    reasonably large, and otherwise (c) the largest fitting block.
    """
    row_bytes = w * h * itemsize
    cands = [d for d in range(1, n + 1) if n % d == 0 and (d % 8 == 0 or d == n)]
    fitting = [d for d in cands if d * row_bytes <= target_bytes] or [min(cands)]
    sizable = [d for d in fitting if d * row_bytes >= (512 << 10)] or fitting
    even4 = [d for d in sizable if (n // d) % 2 == 0 and n // d >= 4]
    even2 = [d for d in sizable if (n // d) % 2 == 0 and n // d >= 2]
    if even4:
        return max(even4)
    if even2:
        return max(even2)
    return max(fitting)


def attention_forward(x, w, v, *, matmul_in_bf16=False):
    """x: [N, W, H], w: [H, H], v: [H].

    Returns (after_attention [N, 1, H] in x.dtype, att_weights [N, W] float32).
    Set matmul_in_bf16=True for the production path (bf16 DMA + bf16 MXU,
    f32 accumulation); results then differ from an f32 reference at ~bf16
    rounding level.
    """
    N, W, H = x.shape
    out_dtype = x.dtype

    # Physical VMEM (64 MiB per TC on v7x, 128 MiB on v5e/v6e).
    try:
        info = pltpu.get_tpu_info()
        vmem_cap = int(getattr(info, "vmem_capacity_bytes", 128 << 20))
    except Exception:
        vmem_cap = 128 << 20
    limit_cap = int(vmem_cap * 0.6)                 # ~76 MiB (v5e/v6e), ~38 MiB (v7x)
    target_bytes = max(2 << 20, min(8 << 20, limit_cap // 10))

    # Pad N to a sublane-friendly multiple so a large aligned B_N always exists.
    pad_to = 16 if (matmul_in_bf16 or x.dtype == jnp.bfloat16) else 8
    N_pad = ((N + pad_to - 1) // pad_to) * pad_to
    x_p = jnp.pad(x, ((0, N_pad - N), (0, 0), (0, 0))) if N_pad != N else x

    # Production path: bf16 operands for the x DMA and the MXU matmul.
    if matmul_in_bf16:
        x_in = x_p.astype(jnp.bfloat16)
        w_in = w.astype(jnp.bfloat16)
        matmul_dtype = jnp.bfloat16
    else:
        x_in = x_p
        w_in = w
        matmul_dtype = x.dtype
    v_row = v.reshape(1, H).astype(jnp.float32)

    B_N = _pick_block_n(N_pad, W, H, x_in.dtype.itemsize, target_bytes)
    grid = (N_pad // B_N,)

    # VMEM budget: double-buffered x/out/att blocks + weights + f32 intermediates
    # (wplus, exp/product terms) -- ~3x the f32 block size.
    x_blk = B_N * W * H * x_in.dtype.itemsize
    out_blk = B_N * H * jnp.dtype(out_dtype).itemsize + B_N * W * 4
    wgt = H * H * w_in.dtype.itemsize + H * 4
    interm = 3 * B_N * W * H * 4
    vmem_needed = 2 * (x_blk + out_blk) + 2 * wgt + interm
    vmem_limit = int(min(max(2 * vmem_needed, 32 << 20), limit_cap))
    if vmem_needed > vmem_limit:
        vmem_limit = int(min(vmem_needed + (4 << 20), int(vmem_cap * 0.9)))

    cost = pl.CostEstimate(
        flops=2 * N_pad * W * H * H + 4 * N_pad * W * H,
        transcendentals=N_pad * W * H + N_pad * W,          # tanh + exp
        bytes_accessed=(N_pad * W * H * x_in.dtype.itemsize
                        + H * H * w_in.dtype.itemsize + H * 4
                        + N_pad * H * jnp.dtype(out_dtype).itemsize
                        + N_pad * W * 4),
    )

    out2d, att3d = pl.pallas_call(
        partial(_attention_kernel, matmul_dtype=matmul_dtype),
        out_shape=(
            jax.ShapeDtypeStruct((N_pad, H), out_dtype),
            jax.ShapeDtypeStruct((N_pad, W, 1), jnp.float32),
        ),
        grid_spec=pltpu.PrefetchScalarGridSpec(
            num_scalar_prefetch=0,
            grid=grid,
            in_specs=[
                pl.BlockSpec((B_N, W, H), lambda b: (b, 0, 0)),   # x block
                pl.BlockSpec((H, H), lambda b: (0, 0)),           # w (replicated)
                pl.BlockSpec((1, H), lambda b: (0, 0)),           # v (replicated)
            ],
            out_specs=[
                pl.BlockSpec((B_N, H), lambda b: (b, 0)),         # after-attention
                pl.BlockSpec((B_N, W, 1), lambda b: (b, 0, 0)),   # attention weights
            ],
        ),
        compiler_params=pltpu.CompilerParams(
            dimension_semantics=("parallel",),
            vmem_limit_bytes=vmem_limit,
        ),
        cost_estimate=cost,
    )(x_in, w_in, v_row)

    # Wrapper-side layout plumbing: drop padding rows, restore [N,1,H] / [N,W].
    return out2d[:N].reshape(N, 1, H), att3d[:N].reshape(N, W)


def _reference(x, w, v):
    wplus = jnp.tanh(jnp.einsum("nwh,hk->nwk", x, w))
    scores = jnp.einsum("nwk,k->nw", wplus, v)
    att = jax.nn.softmax(scores, axis=1)
    out = jnp.einsum("nw,nwh->nh", att, x)[:, None, :]
    return out, att


if __name__ == "__main__":
    # Small shapes consistent with the module: N batch, W words, H hidden dim.
    # H=128 keeps reshapes tile-aligned (views) and lanes fully used.
    N, W, H = 4, 8, 128
    key = jax.random.PRNGKey(0)
    kx, kw, kv = jax.random.split(key, 3)

    x = jax.random.normal(kx, (N, W, H), dtype=jnp.float32)

    # reset_parameters(): uniform(-stdv, stdv), stdv = 1/sqrt(dim)
    stdv = 1.0 / math.sqrt(H)
    w = jax.random.uniform(kw, (H, H), minval=-stdv, maxval=stdv, dtype=jnp.float32)
    v = jax.random.uniform(kv, (H,), minval=-stdv, maxval=stdv, dtype=jnp.float32)

    ref_out, ref_att = _reference(x, w, v)

    # Exact f32 path (tight tolerance).
    out, att = attention_forward(x, w, v, matmul_in_bf16=False)
    out = jax.block_until_ready(out)
    att = jax.block_until_ready(att)
    assert out.shape == (N, 1, H)
    assert att.shape == (N, W)
    assert jnp.allclose(out, ref_out, atol=1e-5, rtol=1e-5)
    assert jnp.allclose(att, ref_att, atol=1e-5, rtol=1e-5)

    # Production bf16 MXU/DMA path (tolerance gated on the flag: bf16 rounding).
    out_bf, att_bf = attention_forward(x, w, v, matmul_in_bf16=True)
    out_bf = jax.block_until_ready(out_bf)
    att_bf = jax.block_until_ready(att_bf)
    assert out_bf.shape == (N, 1, H)
    assert att_bf.shape == (N, W)
    assert jnp.allclose(out_bf, ref_out, atol=3e-2, rtol=3e-2)
    assert jnp.allclose(att_bf, ref_att, atol=3e-2, rtol=3e-2)

    print("KERNEL_OK")
</pallas_src>

<mosaic_0001>
module attributes {stable_mosaic.version = 11 : i64} {
  func.func @_attention_kernel(%arg0: i32, %arg1: memref<8x8x128xf32, #tpu.memory_space<vmem>>, %arg2: memref<128x128xf32, #tpu.memory_space<vmem>>, %arg3: memref<1x128xf32, #tpu.memory_space<vmem>>, %arg4: memref<8x128xf32, #tpu.memory_space<vmem>>, %arg5: memref<8x8x1xf32, #tpu.memory_space<vmem>>) attributes {dimension_semantics = [#tpu.dimension_semantics<parallel>], iteration_bounds = array<i64: 1>, scalar_prefetch = 0 : i64, scratch_operands = 0 : i64, tpu.core_type = #tpu.core_type<tc>, window_params = [{transform_indices = @transform_0, window_bounds = array<i64: 8, 8, 128>}, {pipeline_mode = #tpu.pipeline_mode<synchronous>, transform_indices = @transform_1, window_bounds = array<i64: 128, 128>}, {pipeline_mode = #tpu.pipeline_mode<synchronous>, transform_indices = @transform_2, window_bounds = array<i64: 1, 128>}, {transform_indices = @transform_3, window_bounds = array<i64: 8, 128>}, {transform_indices = @transform_4, window_bounds = array<i64: 8, 8, 1>}]} {
    %c0 = arith.constant 0 : index
    %c0_0 = arith.constant 0 : index
    %c0_1 = arith.constant 0 : index
    %0 = vector.load %arg1[%c0, %c0_0, %c0_1] : memref<8x8x128xf32, #tpu.memory_space<vmem>>, vector<8x8x128xf32>
    %1 = vector.shape_cast %0 : vector<8x8x128xf32> to vector<64x128xf32>
    %c0_2 = arith.constant 0 : index
    %c0_3 = arith.constant 0 : index
    %2 = vector.load %arg2[%c0_2, %c0_3] : memref<128x128xf32, #tpu.memory_space<vmem>>, vector<128x128xf32>
    %cst = arith.constant dense<0.000000e+00> : vector<64x128xf32>
    %3 = tpu.matmul %1, %2, %cst {dimension_numbers = #tpu.dot_dimension_numbers<[1], [0], [0], [1], [0, 0, 1, 1], [], []>} : vector<64x128xf32>, vector<128x128xf32>, vector<64x128xf32> -> vector<64x128xf32>
    %4 = math.tanh %3 : vector<64x128xf32>
    %5 = vector.shape_cast %4 : vector<64x128xf32> to vector<8x8x128xf32>
    %c0_4 = arith.constant 0 : index
    %c0_5 = arith.constant 0 : index
    %6 = vector.load %arg3[%c0_4, %c0_5] : memref<1x128xf32, #tpu.memory_space<vmem>>, vector<1x128xf32>
    %7 = vector.shape_cast %6 : vector<1x128xf32> to vector<1x1x128xf32>
    %8 = vector.broadcast %7 : vector<1x1x128xf32> to vector<8x8x128xf32>
    %9 = arith.mulf %5, %8 : vector<8x8x128xf32>
    %cst_6 = arith.constant dense<0.000000e+00> : vector<8x8xf32>
    %10 = vector.multi_reduction <add>, %9, %cst_6 [2] : vector<8x8x128xf32> to vector<8x8xf32>
    %11 = vector.shape_cast %10 : vector<8x8xf32> to vector<8x8x1xf32>
    %cst_7 = arith.constant dense<0xFF800000> : vector<8x1xf32>
    %12 = vector.multi_reduction <maximumf>, %11, %cst_7 [1] : vector<8x8x1xf32> to vector<8x1xf32>
    %13 = vector.shape_cast %12 : vector<8x1xf32> to vector<8x1x1xf32>
    %14 = vector.broadcast %13 : vector<8x1x1xf32> to vector<8x8x1xf32>
    %15 = arith.subf %11, %14 : vector<8x8x1xf32>
    %16 = math.exp %15 : vector<8x8x1xf32>
    %cst_8 = arith.constant dense<0.000000e+00> : vector<8x1xf32>
    %17 = vector.multi_reduction <add>, %16, %cst_8 [1] : vector<8x8x1xf32> to vector<8x1xf32>
    %18 = vector.shape_cast %17 : vector<8x1xf32> to vector<8x1x1xf32>
    %19 = tpu.reciprocal %18 : vector<8x1x1xf32> -> vector<8x1x1xf32>
    %20 = vector.broadcast %19 : vector<8x1x1xf32> to vector<8x8x1xf32>
    %21 = arith.mulf %16, %20 : vector<8x8x1xf32>
    %c0_9 = arith.constant 0 : index
    %c0_10 = arith.constant 0 : index
    %c0_11 = arith.constant 0 : index
    %22 = vector.load %arg5[%c0_9, %c0_10, %c0_11] : memref<8x8x1xf32, #tpu.memory_space<vmem>>, vector<8x8x1xf32>
    tpu.vector_store %arg5[%c0_9, %c0_10, %c0_11], %21 {strides = array<i32>} : memref<8x8x1xf32, #tpu.memory_space<vmem>>, vector<8x8x1xf32>,
    %23 = vector.broadcast %21 : vector<8x8x1xf32> to vector<8x8x128xf32>
    %24 = arith.mulf %23, %0 : vector<8x8x128xf32>
    %cst_12 = arith.constant dense<0.000000e+00> : vector<8x128xf32>
    %25 = vector.multi_reduction <add>, %24, %cst_12 [1] : vector<8x8x128xf32> to vector<8x128xf32>
    %c0_13 = arith.constant 0 : index
    %c0_14 = arith.constant 0 : index
    %26 = vector.load %arg4[%c0_13, %c0_14] : memref<8x128xf32, #tpu.memory_space<vmem>>, vector<8x128xf32>
    tpu.vector_store %arg4[%c0_13, %c0_14], %25 {strides = array<i32>} : memref<8x128xf32, #tpu.memory_space<vmem>>, vector<8x128xf32>,
    return
  }
  func.func @transform_0(%arg0: i32) -> (i32, i32, i32) {
    %c0_i32 = arith.constant 0 : i32
    %c0_i32_0 = arith.constant 0 : i32
    %c0_i32_1 = arith.constant 0 : i32
    return %arg0, %c0_i32, %c0_i32_0 : i32, i32, i32
  }
  func.func @transform_1(%arg0: i32) -> (i32, i32) {
    %c0_i32 = arith.constant 0 : i32
    %c0_i32_0 = arith.constant 0 : i32
    %c0_i32_1 = arith.constant 0 : i32
    return %c0_i32, %c0_i32_0 : i32, i32
  }
  func.func @transform_2(%arg0: i32) -> (i32, i32) {
    %c0_i32 = arith.constant 0 : i32
    %c0_i32_0 = arith.constant 0 : i32
    %c0_i32_1 = arith.constant 0 : i32
    return %c0_i32, %c0_i32_0 : i32, i32
  }
  func.func @transform_3(%arg0: i32) -> (i32, i32) {
    %c0_i32 = arith.constant 0 : i32
    %c0_i32_0 = arith.constant 0 : i32
    return %arg0, %c0_i32 : i32, i32
  }
  func.func @transform_4(%arg0: i32) -> (i32, i32, i32) {
    %c0_i32 = arith.constant 0 : i32
    %c0_i32_0 = arith.constant 0 : i32
    %c0_i32_1 = arith.constant 0 : i32
    return %arg0, %c0_i32, %c0_i32_0 : i32, i32, i32
  }
}

</mosaic_0001>

<llo_original>
// kernel: tpu_custom_call.1
$region0: #{tpu_custom_call.1}
  #allocation0 [shape = 'u32[]', space=smem, size = 0x4, offset = 0x4, fixed_abs, tag = 'smem constant byte address 0x4 - core index']
  #allocation1 [shape = 'u32[144,128]{1,0:T(1,128)}', space=vmem, size = 0x12000, scoped, tag = 'internal scratch']
  %s0 = inlined_call_operand.hbm [shape: f32[8,8,128], index: 0, kind: input, shape index: {}]
  %s1 = inlined_call_operand.hbm [shape: f32[128,128], index: 1, kind: input, shape index: {}]
  %s2 = inlined_call_operand.vmem [shape: f32[1,128], index: 2, kind: input, shape index: {}]
  %s3 = inlined_call_operand.hbm [shape: f32[8,128], index: 3, kind: output, shape index: {0}]
  %s4 = inlined_call_operand.vmem [shape: f32[8,8,1], index: 4, kind: output, shape index: {1}]
  %5 = xla_tuple %s3, %s4
  %s6 = sld [smem:[#allocation0]]
  $region38: #{tpu_custom_call.1} parent=0
    _
  %s8 = ssub.s32 1, %s6
  %s9 = scalar_select 0, %s8, %s6
  $region1: #{tpu_custom_call.1} parent=0
    #allocation2 [shape = 'u8[32768]{0}', space=vmem, size = 0x8000, scoped, tag = 'input window, operand 0, single buffered']
    #allocation3 [shape = 's32[1]{0}', space=sflag, size = 0x4, scoped, tag = 'scoped memory for tpu_custom_call.1']
    #allocation4 [shape = 's32[1]{0}', space=sflag, size = 0x4, scoped, tag = 'scoped memory for tpu_custom_call.1']
    #allocation5 [shape = 'u8[65536]{0}', space=vmem, size = 0x10000, scoped, tag = 'input window, operand 1, single buffered']
    #allocation6 [shape = 's32[1]{0}', space=sflag, size = 0x4, scoped, tag = 'scoped memory for tpu_custom_call.1']
    #allocation7 [shape = 'u8[4096]{0}', space=vmem, size = 0x1000, scoped, tag = 'output window, operand 0, single buffered']
    %10 = vsyncpa [#allocation3], 0
    %11 = vsyncpa [#allocation6], 0
    %12 = vsyncpa [#allocation4], 0
    // Predicated region
    $region2: #{tpu_custom_call.1} parent=1 // pred_check
      _
    $region3: #{tpu_custom_call.1} parent=1 // pred_check_branch
      %14 = sbr.rel (0) target = $region5
    $region4: #{tpu_custom_call.1} parent=1 // pred_region
      %s16 = ssub.s32 1024, 1024
      %17 = vsyncadd [#allocation3], %s16
      %s18 = sshll.u32 [#allocation2], 4
      %s19 = int_to_ptr.vmem [resolvable:$true] %s18
      %24 = dma.hbm_to_vmem [thread:$0]  %s0, 1024, %s19, [#allocation3], 128, 128, 8
    $region5: #{tpu_custom_call.1} parent=1 // pred_fallthru
      _
    // Predicated region
    $region6: #{tpu_custom_call.1} parent=1 // pred_check
      _
    $region7: #{tpu_custom_call.1} parent=1 // pred_check_branch
      %26 = sbr.rel (0) target = $region9
    $region8: #{tpu_custom_call.1} parent=1 // pred_region
      %s28 = ssub.s32 2048, 2048
      %29 = vsyncadd [#allocation6], %s28
      %s30 = sshll.u32 [#allocation5], 4
      %s31 = int_to_ptr.vmem [resolvable:$true] %s30
      %36 = dma.hbm_to_vmem [thread:$0]  %s1, 2048, %s31, [#allocation6], 128, 128, 8
    $region9: #{tpu_custom_call.1} parent=1 // pred_fallthru
      _
    // Predicated region
    $region10: #{tpu_custom_call.1} parent=1 // pred_check
      _
    $region11: #{tpu_custom_call.1} parent=1 // pred_check_branch
      %38 = sbr.rel (0) target = $region13
    $region12: #{tpu_custom_call.1} parent=1 // pred_region
      _
    $region13: #{tpu_custom_call.1} parent=1 // pred_fallthru
      _
    // Predicated region
    $region14: #{tpu_custom_call.1} parent=1 // pred_check
      _
    $region15: #{tpu_custom_call.1} parent=1 // pred_check_branch
      %40 = sbr.rel (0) target = $region17
    $region16: #{tpu_custom_call.1} parent=1 // pred_region
      %41 = dma.done [#allocation3], 1024
    $region17: #{tpu_custom_call.1} parent=1 // pred_fallthru
      _
    // Predicated region
    $region18: #{tpu_custom_call.1} parent=1 // pred_check
      _
    $region19: #{tpu_custom_call.1} parent=1 // pred_check_branch
      %43 = sbr.rel (0) target = $region21
    $region20: #{tpu_custom_call.1} parent=1 // pred_region
      %44 = dma.done [#allocation6], 2048
    $region21: #{tpu_custom_call.1} parent=1 // pred_fallthru
      _
    %v45 = vld [vmem:[#allocation2] sm:$0xff]
    %v46 = vld [vmem:[#allocation2 + $0x8] sm:$0xff]
    %v47 = vld [vmem:[#allocation2 + $0x10] sm:$0xff]
    %v48 = vld [vmem:[#allocation2 + $0x18] sm:$0xff]
    %v49 = vld [vmem:[#allocation2 + $0x20] sm:$0xff]
    %v50 = vld [vmem:[#allocation2 + $0x28] sm:$0xff]
    %v51 = vld [vmem:[#allocation2 + $0x30] sm:$0xff]
    %v52 = vld [vmem:[#allocation2 + $0x38] sm:$0xff]
    %v53 = vld [vmem:[#allocation5] sm:$0xff]
    %v54 = vld [vmem:[#allocation5 + $0x8] sm:$0xff]
    %v55 = vld [vmem:[#allocation5 + $0x10] sm:$0xff]
    %v56 = vld [vmem:[#allocation5 + $0x18] sm:$0xff]
    %v57 = vld [vmem:[#allocation5 + $0x20] sm:$0xff]
    %v58 = vld [vmem:[#allocation5 + $0x28] sm:$0xff]
    %v59 = vld [vmem:[#allocation5 + $0x30] sm:$0xff]
    %v60 = vld [vmem:[#allocation5 + $0x38] sm:$0xff]
    %v61 = vld [vmem:[#allocation5 + $0x40] sm:$0xff]
    %v62 = vld [vmem:[#allocation5 + $0x48] sm:$0xff]
    %v63 = vld [vmem:[#allocation5 + $0x50] sm:$0xff]
    %v64 = vld [vmem:[#allocation5 + $0x58] sm:$0xff]
    %v65 = vld [vmem:[#allocation5 + $0x60] sm:$0xff]
    %v66 = vld [vmem:[#allocation5 + $0x68] sm:$0xff]
    %v67 = vld [vmem:[#allocation5 + $0x70] sm:$0xff]
    %v68 = vld [vmem:[#allocation5 + $0x78] sm:$0xff]
    %69 = vmatprep.subr.mxu0 0.0
    %70 = vmatpush1.msra.mxu0 %v68
    %71 = vmatprep.subr.mxu0 0.0
    %72 = vmatpush1.msra.mxu0 %v67
    %73 = vmatprep.subr.mxu0 0.0
    %74 = vmatpush1.msra.mxu0 %v66
    %75 = vmatprep.subr.mxu0 0.0
    %76 = vmatpush1.msra.mxu0 %v65
    %77 = vmatprep.subr.mxu0 0.0
    %78 = vmatpush1.msra.mxu0 %v64
    %79 = vmatprep.subr.mxu0 0.0
    %80 = vmatpush1.msra.mxu0 %v63
    %81 = vmatprep.subr.mxu0 0.0
    %82 = vmatpush1.msra.mxu0 %v62
    %83 = vmatprep.subr.mxu0 0.0
    %84 = vmatpush1.msra.mxu0 %v61
    %85 = vmatprep.subr.mxu0 0.0
    %86 = vmatpush1.msra.mxu0 %v60
    %87 = vmatprep.subr.mxu0 0.0
    %88 = vmatpush1.msra.mxu0 %v59
    %89 = vmatprep.subr.mxu0 0.0
    %90 = vmatpush1.msra.mxu0 %v58
    %91 = vmatprep.subr.mxu0 0.0
    %92 = vmatpush1.msra.mxu0 %v57
    %93 = vmatprep.subr.mxu0 0.0
    %94 = vmatpush1.msra.mxu0 %v56
    %95 = vmatprep.subr.mxu0 0.0
    %96 = vmatpush1.msra.mxu0 %v55
    %97 = vmatprep.subr.mxu0 0.0
    %98 = vmatpush1.msra.mxu0 %v54
    %99 = vmatprep.subr.mxu0 0.0
    %100 = vmatpush1.msra.mxu0 %v53
    %101 = vmatprep.subr.mxu0 0.0
    %102 = vmatpush2.msra.mxu0 0.0
    %103 = vmatprep.subr.mxu0 0.0
    %104 = vmatpush2.msra.mxu0 0.0
    %105 = vmatprep.subr.mxu0 0.0
    %106 = vmatpush2.msra.mxu0 0.0
    %107 = vmatprep.subr.mxu0 0.0
    %108 = vmatpush2.msra.mxu0 0.0
    %109 = vmatprep.subr.mxu0 0.0
    %110 = vmatpush2.msra.mxu0 0.0
    %111 = vmatprep.subr.mxu0 0.0
    %112 = vmatpush2.msra.mxu0 0.0
    %113 = vmatprep.subr.mxu0 0.0
    %114 = vmatpush2.msra.mxu0 0.0
    %115 = vmatprep.subr.mxu0 0.0
    %116 = vmatpush2.msra.mxu0 0.0
    %117 = vmatprep.subr.mxu0 0.0
    %118 = vmatpush2.msra.mxu0 0.0
    %119 = vmatprep.subr.mxu0 0.0
    %120 = vmatpush2.msra.mxu0 0.0
    %121 = vmatprep.subr.mxu0 0.0
    %122 = vmatpush2.msra.mxu0 0.0
    %123 = vmatprep.subr.mxu0 0.0
    %124 = vmatpush2.msra.mxu0 0.0
    %125 = vmatprep.subr.mxu0 0.0
    %126 = vmatpush2.msra.mxu0 0.0
    %127 = vmatprep.subr.mxu0 0.0
    %128 = vmatpush2.msra.mxu0 0.0
    %129 = vmatprep.subr.mxu0 0.0
    %130 = vmatpush2.msra.mxu0 0.0
    %131 = vmatprep.subr.mxu0 0.0
    %132 = vmatpush2.msra.mxu0 0.0
    %133 = vmatprep.mubr.f32.mxu0 0.0
    %134 = vmatmul.mubr.f32.gmra.mxu0 %v45
    %v135 = vpop.f32.mrf.mxu0
    %v136 = vadd.f32 0.0, %v135
    %v137 = vpop.f32.mrf.mxu0
    %138 = vmatprep.mubr.f32.mxu0 0.0
    %139 = vmatmul.mubr.f32.gmra.mxu0 %v46
    %v140 = vpop.f32.mrf.mxu0
    %v141 = vadd.f32 0.0, %v140
    %v142 = vpop.f32.mrf.mxu0
    %143 = vmatprep.mubr.f32.mxu0 0.0
    %144 = vmatmul.mubr.f32.gmra.mxu0 %v47
    %v145 = vpop.f32.mrf.mxu0
    %v146 = vadd.f32 0.0, %v145
    %v147 = vpop.f32.mrf.mxu0
    %148 = vmatprep.mubr.f32.mxu0 0.0
    %149 = vmatmul.mubr.f32.gmra.mxu0 %v48
    %v150 = vpop.f32.mrf.mxu0
    %v151 = vadd.f32 0.0, %v150
    %v152 = vpop.f32.mrf.mxu0
    %153 = vmatprep.mubr.f32.mxu0 0.0
    %154 = vmatmul.mubr.f32.gmra.mxu0 %v49
    %v155 = vpop.f32.mrf.mxu0
    %v156 = vadd.f32 0.0, %v155
    %v157 = vpop.f32.mrf.mxu0
    %158 = vmatprep.mubr.f32.mxu0 0.0
    %159 = vmatmul.mubr.f32.gmra.mxu0 %v50
    %v160 = vpop.f32.mrf.mxu0
    %v161 = vadd.f32 0.0, %v160
    %v162 = vpop.f32.mrf.mxu0
    %163 = vmatprep.mubr.f32.mxu0 0.0
    %164 = vmatmul.mubr.f32.gmra.mxu0 %v51
    %v165 = vpop.f32.mrf.mxu0
    %v166 = vadd.f32 0.0, %v165
    %v167 = vpop.f32.mrf.mxu0
    %168 = vmatprep.mubr.f32.mxu0 0.0
    %169 = vmatmul.mubr.f32.gmra.mxu0 %v52
    %v170 = vpop.f32.mrf.mxu0
    %v171 = vadd.f32 0.0, %v170
    %v172 = vpop.f32.mrf.mxu0
    %173 = vdwg.mxu0
    %v174 = vtanh.pop %v136
    %v175 = vtanh.pop %v141
    %v176 = vtanh.pop %v146
    %v177 = vtanh.pop %v151
    %v178 = vtanh.pop %v156
    %v179 = vtanh.pop %v161
    %v180 = vtanh.pop %v166
    %v181 = vtanh.pop %v171
    %v182 = vld [vmem:[%s2] sm:$0x1]
    %v184 = vlaneseq
    %v185 = vshrl.u32 %v184, 7
    %v186 = vsub.s32 0, %v185
    %v187 = vrot.slane %v182, %v186
    %v189 = vmul.f32 %v174, %v187
    %v190 = vmul.f32 %v175, %v187
    %v191 = vmul.f32 %v176, %v187
    %v192 = vmul.f32 %v177, %v187
    %v193 = vmul.f32 %v178, %v187
    %v194 = vmul.f32 %v179, %v187
    %v195 = vmul.f32 %v180, %v187
    %v196 = vmul.f32 %v181, %v187
    %197 = vadd.xlane.f32.xlu0 %v189
    %v198 = vpop.xlane.xlu0 %197
    %199 = vadd.xlane.f32.xlu0 %v190
    %v200 = vpop.xlane.xlu0 %199
    %201 = vadd.xlane.f32.xlu0 %v191
    %v202 = vpop.xlane.xlu0 %201
    %203 = vadd.xlane.f32.xlu0 %v192
    %v204 = vpop.xlane.xlu0 %203
    %205 = vadd.xlane.f32.xlu0 %v193
    %v206 = vpop.xlane.xlu0 %205
    %207 = vadd.xlane.f32.xlu0 %v194
    %v208 = vpop.xlane.xlu0 %207
    %209 = vadd.xlane.f32.xlu0 %v195
    %v210 = vpop.xlane.xlu0 %209
    %211 = vadd.xlane.f32.xlu0 %v196
    %v212 = vpop.xlane.xlu0 %211
    %v213 = vrot.slane %v198, 4
    %v214 = vmax.f32 %v198, %v213
    %v215 = vrot.slane %v214, 2
    %v216 = vmax.f32 %v214, %v215
    %v217 = vrot.slane %v216, 1
    %v218 = vmax.f32 %v216, %v217
    %v219 = vrot.slane %v200, 4
    %v220 = vmax.f32 %v200, %v219
    %v221 = vrot.slane %v220, 2
    %v222 = vmax.f32 %v220, %v221
    %v223 = vrot.slane %v222, 1
    %v224 = vmax.f32 %v222, %v223
    %v225 = vrot.slane %v202, 4
    %v226 = vmax.f32 %v202, %v225
    %v227 = vrot.slane %v226, 2
    %v228 = vmax.f32 %v226, %v227
    %v229 = vrot.slane %v228, 1
    %v230 = vmax.f32 %v228, %v229
    %v231 = vrot.slane %v204, 4
    %v232 = vmax.f32 %v204, %v231
    %v233 = vrot.slane %v232, 2
    %v234 = vmax.f32 %v232, %v233
    %v235 = vrot.slane %v234, 1
    %v236 = vmax.f32 %v234, %v235
    %v237 = vrot.slane %v206, 4
    %v238 = vmax.f32 %v206, %v237
    %v239 = vrot.slane %v238, 2
    %v240 = vmax.f32 %v238, %v239
    %v241 = vrot.slane %v240, 1
    %v242 = vmax.f32 %v240, %v241
    %v243 = vrot.slane %v208, 4
    %v244 = vmax.f32 %v208, %v243
    %v245 = vrot.slane %v244, 2
    %v246 = vmax.f32 %v244, %v245
    %v247 = vrot.slane %v246, 1
    %v248 = vmax.f32 %v246, %v247
    %v249 = vrot.slane %v210, 4
    %v250 = vmax.f32 %v210, %v249
    %v251 = vrot.slane %v250, 2
    %v252 = vmax.f32 %v250, %v251
    %v253 = vrot.slane %v252, 1
    %v254 = vmax.f32 %v252, %v253
    %v255 = vrot.slane %v212, 4
    %v256 = vmax.f32 %v212, %v255
    %v257 = vrot.slane %v256, 2
    %v258 = vmax.f32 %v256, %v257
    %v259 = vrot.slane %v258, 1
    %v260 = vmax.f32 %v258, %v259
    %v261 = vsub.f32 %v198, %v218
    %v262 = vsub.f32 %v200, %v224
    %v263 = vsub.f32 %v202, %v230
    %v264 = vsub.f32 %v204, %v236
    %v265 = vsub.f32 %v206, %v242
    %v266 = vsub.f32 %v208, %v248
    %v267 = vsub.f32 %v210, %v254
    %v268 = vsub.f32 %v212, %v260
    %v269 = vmul.f32 %v261, 1.442695
    %v270 = vpow.pop %v269
    %v271 = vmul.f32 %v262, 1.442695
    %v272 = vpow.pop %v271
    %v273 = vmul.f32 %v263, 1.442695
    %v274 = vpow.pop %v273
    %v275 = vmul.f32 %v264, 1.442695
    %v276 = vpow.pop %v275
    %v277 = vmul.f32 %v265, 1.442695
    %v278 = vpow.pop %v277
    %v279 = vmul.f32 %v266, 1.442695
    %v280 = vpow.pop %v279
    %v281 = vmul.f32 %v267, 1.442695
    %v282 = vpow.pop %v281
    %v283 = vmul.f32 %v268, 1.442695
    %v284 = vpow.pop %v283
    %v285 = vrot.slane %v270, 4
    %v286 = vadd.f32 %v270, %v285
    %v287 = vrot.slane %v286, 2
    %v288 = vadd.f32 %v286, %v287
    %v289 = vrot.slane %v288, 1
    %v290 = vadd.f32 %v288, %v289
    %v291 = vrot.slane %v272, 4
    %v292 = vadd.f32 %v272, %v291
    %v293 = vrot.slane %v292, 2
    %v294 = vadd.f32 %v292, %v293
    %v295 = vrot.slane %v294, 1
    %v296 = vadd.f32 %v294, %v295
    %v297 = vrot.slane %v274, 4
    %v298 = vadd.f32 %v274, %v297
    %v299 = vrot.slane %v298, 2
    %v300 = vadd.f32 %v298, %v299
    %v301 = vrot.slane %v300, 1
    %v302 = vadd.f32 %v300, %v301
    %v303 = vrot.slane %v276, 4
    %v304 = vadd.f32 %v276, %v303
    %v305 = vrot.slane %v304, 2
    %v306 = vadd.f32 %v304, %v305
    %v307 = vrot.slane %v306, 1
    %v308 = vadd.f32 %v306, %v307
    %v309 = vrot.slane %v278, 4
    %v310 = vadd.f32 %v278, %v309
    %v311 = vrot.slane %v310, 2
    %v312 = vadd.f32 %v310, %v311
    %v313 = vrot.slane %v312, 1
    %v314 = vadd.f32 %v312, %v313
    %v315 = vrot.slane %v280, 4
    %v316 = vadd.f32 %v280, %v315
    %v317 = vrot.slane %v316, 2
    %v318 = vadd.f32 %v316, %v317
    %v319 = vrot.slane %v318, 1
    %v320 = vadd.f32 %v318, %v319
    %v321 = vrot.slane %v282, 4
    %v322 = vadd.f32 %v282, %v321
    %v323 = vrot.slane %v322, 2
    %v324 = vadd.f32 %v322, %v323
    %v325 = vrot.slane %v324, 1
    %v326 = vadd.f32 %v324, %v325
    %v327 = vrot.slane %v284, 4
    %v328 = vadd.f32 %v284, %v327
    %v329 = vrot.slane %v328, 2
    %v330 = vadd.f32 %v328, %v329
    %v331 = vrot.slane %v330, 1
    %v332 = vadd.f32 %v330, %v331
    %v333 = vrcp.pop %v290
    %v334 = vrcp.pop %v296
    %v335 = vrcp.pop %v302
    %v336 = vrcp.pop %v308
    %v337 = vrcp.pop %v314
    %v338 = vrcp.pop %v320
    %v339 = vrcp.pop %v326
    %v340 = vrcp.pop %v332
    %v341 = vmul.f32 %v270, %v333
    %v342 = vmul.f32 %v272, %v334
    %v343 = vmul.f32 %v274, %v335
    %v344 = vmul.f32 %v276, %v336
    %v345 = vmul.f32 %v278, %v337
    %v346 = vmul.f32 %v280, %v338
    %v347 = vmul.f32 %v282, %v339
    %v348 = vmul.f32 %v284, %v340
    %vm349 = vcmask 7168
    %350 = vst.msk [vmem:[%s4] sm:$0xff] %vm349, %v341
    %351 = vst.msk [vmem:[%s4 + $0x8] sm:$0xff] %vm349, %v342
    %352 = vst.msk [vmem:[%s4 + $0x10] sm:$0xff] %vm349, %v343
    %353 = vst.msk [vmem:[%s4 + $0x18] sm:$0xff] %vm349, %v344
    %354 = vst.msk [vmem:[%s4 + $0x20] sm:$0xff] %vm349, %v345
    %355 = vst.msk [vmem:[%s4 + $0x28] sm:$0xff] %vm349, %v346
    %356 = vst.msk [vmem:[%s4 + $0x30] sm:$0xff] %vm349, %v347
    %357 = vst.msk [vmem:[%s4 + $0x38] sm:$0xff] %vm349, %v348
    %v358 = vmul.f32 %v341, %v45
    %v359 = vmul.f32 %v342, %v46
    %v360 = vmul.f32 %v343, %v47
    %v361 = vmul.f32 %v344, %v48
    %v362 = vmul.f32 %v345, %v49
    %v363 = vmul.f32 %v346, %v50
    %v364 = vmul.f32 %v347, %v51
    %v365 = vmul.f32 %v348, %v52
    %v366 = vrot.slane %v358, 4
    %v367 = vadd.f32 %v358, %v366
    %v368 = vrot.slane %v367, 2
    %v369 = vadd.f32 %v367, %v368
    %v370 = vrot.slane %v369, 1
    %v371 = vadd.f32 %v369, %v370
    %v372 = vrot.slane %v359, 4
    %v373 = vadd.f32 %v359, %v372
    %v374 = vrot.slane %v373, 2
    %v375 = vadd.f32 %v373, %v374
    %v376 = vrot.slane %v375, 1
    %v377 = vadd.f32 %v375, %v376
    %v378 = vrot.slane %v360, 4
    %v379 = vadd.f32 %v360, %v378
    %v380 = vrot.slane %v379, 2
    %v381 = vadd.f32 %v379, %v380
    %v382 = vrot.slane %v381, 1
    %v383 = vadd.f32 %v381, %v382
    %v384 = vrot.slane %v361, 4
    %v385 = vadd.f32 %v361, %v384
    %v386 = vrot.slane %v385, 2
    %v387 = vadd.f32 %v385, %v386
    %v388 = vrot.slane %v387, 1
    %v389 = vadd.f32 %v387, %v388
    %v390 = vrot.slane %v362, 4
    %v391 = vadd.f32 %v362, %v390
    %v392 = vrot.slane %v391, 2
    %v393 = vadd.f32 %v391, %v392
    %v394 = vrot.slane %v393, 1
    %v395 = vadd.f32 %v393, %v394
    %v396 = vrot.slane %v363, 4
    %v397 = vadd.f32 %v363, %v396
    %v398 = vrot.slane %v397, 2
    %v399 = vadd.f32 %v397, %v398
    %v400 = vrot.slane %v399, 1
    %v401 = vadd.f32 %v399, %v400
    %v402 = vrot.slane %v364, 4
    %v403 = vadd.f32 %v364, %v402
    %v404 = vrot.slane %v403, 2
    %v405 = vadd.f32 %v403, %v404
    %v406 = vrot.slane %v405, 1
    %v407 = vadd.f32 %v405, %v406
    %v408 = vrot.slane %v365, 4
    %v409 = vadd.f32 %v365, %v408
    %v410 = vrot.slane %v409, 2
    %v411 = vadd.f32 %v409, %v410
    %v412 = vrot.slane %v411, 1
    %v413 = vadd.f32 %v411, %v412
    %vm422 = vcmask 1041409
    %v423 = vsel %vm422, %v377, %v371
    %vm424 = vcmask 1042434
    %v425 = vsel %vm424, %v383, %v423
    %vm426 = vcmask 1043459
    %v427 = vsel %vm426, %v389, %v425
    %vm428 = vcmask 1044484
    %v429 = vsel %vm428, %v395, %v427
    %vm430 = vcmask 1045509
    %v431 = vsel %vm430, %v401, %v429
    %vm432 = vcmask 1046534
    %v433 = vsel %vm432, %v407, %v431
    %vm434 = vcmask 1047559
    %v435 = vsel %vm434, %v413, %v433
    %437 = vst [vmem:[#allocation7] sm:$0xff] %v435
    // Predicated region
    $region22: #{tpu_custom_call.1} parent=1 // pred_check
      _
    $region23: #{tpu_custom_call.1} parent=1 // pred_check_branch
      %439 = sbr.rel (0) target = $region25
    $region24: #{tpu_custom_call.1} parent=1 // pred_region
      %s441 = ssub.s32 128, 128
      %442 = vsyncadd [#allocation4], %s441
      %s444 = sshll.u32 [#allocation7], 4
      %s445 = int_to_ptr.vmem [resolvable:$true] %s444
      %447 = dma.vmem_to_hbm [thread:$0]  %s445, 128, %s3, [#allocation4]
    $region25: #{tpu_custom_call.1} parent=1 // pred_fallthru
      _
    // Predicated region
    $region26: #{tpu_custom_call.1} parent=1 // pred_check
      _
    $region27: #{tpu_custom_call.1} parent=1 // pred_check_branch
      %449 = sbr.rel (0) target = $region29
    $region28: #{tpu_custom_call.1} parent=1 // pred_region
      _
    $region29: #{tpu_custom_call.1} parent=1 // pred_fallthru
      _
    // Predicated region
    $region30: #{tpu_custom_call.1} parent=1 // pred_check
      _
    $region31: #{tpu_custom_call.1} parent=1 // pred_check_branch
      %451 = sbr.rel (0) target = $region33
    $region32: #{tpu_custom_call.1} parent=1 // pred_region
      %452 = dma.done [#allocation4], 128
    $region33: #{tpu_custom_call.1} parent=1 // pred_fallthru
      _
    // Predicated region
    $region34: #{tpu_custom_call.1} parent=1 // pred_check
      _
    $region35: #{tpu_custom_call.1} parent=1 // pred_check_branch
      %454 = sbr.rel (0) target = $region37
    $region36: #{tpu_custom_call.1} parent=1 // pred_region
      _
    $region37: #{tpu_custom_call.1} parent=1 // pred_fallthru
      _
    %455 = vsyncpa [#allocation3], 1
    %456 = vsyncpa [#allocation6], 1
    %457 = vsyncpa [#allocation4], 1

</llo_original>
